<compile_context>
chip_gen: v6e
topology: v6e:2x2x1
jax: 0.10.0
libtpu: 0.0.40
codegen_flags: <defaults>
</compile_context>

<pallas_src>
import jax
import jax.numpy as jnp
from jax.experimental import pallas as pl
from jax.experimental.pallas import tpu as pltpu


def _round_up(v, m):
    return ((v + m - 1) // m) * m


def _diag_gaussian_mean_kernel(x_ref, wt_ref, b_ref, mean_ref):
    # mean = x @ W^T + b, with the weight pre-transposed once outside the kernel to
    # (K, Np) so the MXU consumes it in natural orientation (no per-tile transpose).
    mean = jnp.dot(x_ref[...], wt_ref[...], preferred_element_type=jnp.float32)
    mean_ref[...] = (mean + b_ref[...]).astype(mean_ref.dtype)  # (TB,Np) + (1,Np)


def prepare_diag_gaussian_params(w, b):
    """One-time parameter prep (call at setup, NOT per step).

    w: (N, K), b: (N,).  Returns (w_t, b_row) with w_t (K, Np), b_row (1, Np) where
    Np = N for narrow heads (N < 128) and the next multiple of 128 for wide heads
    (lane-dense, unmasked stores).
    """
    N, K = w.shape
    Np = _round_up(N, 128) if N >= 128 else N
    w_t = jnp.asarray(w).T  # (K, N) — one-time transpose of a constant parameter
    b_p = jnp.asarray(b)
    if Np != N:
        w_t = jnp.pad(w_t, ((0, 0), (0, Np - N)))
        b_p = jnp.pad(b_p, (0, Np - N))
    return w_t, b_p.reshape(1, Np)


# Stay under the 32 MiB scoped VMEM default on v5e/v6e/v7x without needing
# vmem_limit_bytes at these shapes.
_VMEM_BUDGET_BYTES = 28 * 1024 * 1024


def _pick_batch_tile(B, K, Np, itemsize, max_batch_tile):
    # >= 2 grid steps whenever B allows it (keeps both v7x TensorCores busy), but no
    # smaller than the 8-row sublane granule and no bigger than max_batch_tile.
    TB = min(max_batch_tile, max(8, _round_up(pl.cdiv(B, 2), 8)))
    # Cap by VMEM: double-buffered x + out blocks, double-buffered (grid-constant)
    # weight + bias.  For very large K, a K grid axis ("arbitrary", last) with an f32
    # accumulator would be the right fix on v7x's 64 MiB VMEM; not needed here.
    def est(tb):
        return itemsize * (2 * tb * K + 2 * K * Np + 2 * Np + 2 * tb * Np)
    while TB > 8 and est(TB) > _VMEM_BUDGET_BYTES:
        TB = max(8, _round_up(TB // 2, 8))
    return TB


def diag_gaussian_forward(x, w_t, b_row, logstd, *, max_batch_tile=1024,
                          force_pallas=False):
    """Forward pass of DiagGaussian.

    x:      (B, K) activations.
    w_t:    (K, Np) pre-transposed (and possibly lane-padded) fc_mean weight,
            from prepare_diag_gaussian_params.
    b_row:  (1, Np) fc_mean bias row, from prepare_diag_gaussian_params.
    logstd: (N,) AddBias parameter.
    Returns (action_mean, action_logstd), each (B, N).
    """
    B, K = x.shape
    Np = w_t.shape[1]
    N = logstd.shape[0]

    # Fast path: tiny problems (typical RL policy heads) are pure overhead for a
    # custom kernel — let XLA fuse the matmul + bias directly.
    if not force_pallas and B <= 1024 and K <= 512:
        mean_full = x @ w_t + b_row
    else:
        TB = _pick_batch_tile(B, K, Np, jnp.dtype(x.dtype).itemsize, max_batch_tile)
        mean_full = pl.pallas_call(
            _diag_gaussian_mean_kernel,
            out_shape=jax.ShapeDtypeStruct((B, Np), x.dtype),
            grid=(pl.cdiv(B, TB),),                       # ragged last tile: no batch pad
            in_specs=[
                pl.BlockSpec((TB, K), lambda i: (i, 0)),   # x streamed over batch tiles
                pl.BlockSpec((K, Np), lambda i: (0, 0)),   # weight: constant -> VMEM-resident
                pl.BlockSpec((1, Np), lambda i: (0, 0)),   # bias row: constant -> VMEM-resident
            ],
            out_specs=pl.BlockSpec((TB, Np), lambda i: (i, 0)),
            compiler_params=pltpu.CompilerParams(
                dimension_semantics=("parallel",),         # batch axis shards across TCs (v7x)
            ),
        )(x, w_t, b_row)

    action_mean = mean_full[:, :N] if Np != N else mean_full
    # action_logstd is the (N,) parameter broadcast to (B, N) (AddBias on zeros):
    # produce it lazily in XLA instead of a second HBM store stream in the kernel.
    action_logstd = jnp.broadcast_to(logstd.reshape(1, N), (B, N)).astype(x.dtype)
    return action_mean, action_logstd


if __name__ == "__main__":
    K = 32   # num_inputs
    N = 8    # num_outputs

    key = jax.random.PRNGKey(0)
    kx, kw, kb, kx2 = jax.random.split(key, 4)

    # Deterministic synthetic parameters (mimicking nn.Linear's uniform init range).
    bound = 1.0 / jnp.sqrt(jnp.float32(K))
    w = jax.random.uniform(kw, (N, K), dtype=jnp.float32, minval=-bound, maxval=bound)
    b = jax.random.uniform(kb, (N,), dtype=jnp.float32, minval=-bound, maxval=bound)
    logstd = jnp.zeros((N,), dtype=jnp.float32)   # AddBias(torch.zeros(num_outputs))

    # One-time parameter prep (hoisted out of the per-call hot path).
    w_t, b_row = prepare_diag_gaussian_params(w, b)

    # --- exercise the Pallas kernel (forced), B multiple of the tile ---
    B1 = 8
    x1 = jax.random.normal(kx, (B1, K), dtype=jnp.float32)
    mean1, logstd1 = diag_gaussian_forward(x1, w_t, b_row, logstd, force_pallas=True)
    jax.block_until_ready((mean1, logstd1))
    ref1 = x1 @ w.T + b
    assert mean1.shape == (B1, N) and logstd1.shape == (B1, N)
    assert jnp.allclose(mean1, ref1, atol=1e-5), "mean mismatch (pallas, B=8)"
    assert jnp.allclose(logstd1, jnp.zeros((B1, N)) + logstd, atol=1e-6), "logstd mismatch"

    # --- exercise the ragged-last-tile / multi-step grid path (B not tile-aligned) ---
    B2 = 20
    x2 = jax.random.normal(kx2, (B2, K), dtype=jnp.float32)
    mean2, logstd2 = diag_gaussian_forward(x2, w_t, b_row, logstd, force_pallas=True)
    jax.block_until_ready((mean2, logstd2))
    ref2 = x2 @ w.T + b
    assert mean2.shape == (B2, N)
    assert jnp.allclose(mean2, ref2, atol=1e-5), "mean mismatch (pallas, ragged B=20)"

    # --- default small-problem fast path (plain XLA) must agree as well ---
    mean_fp, logstd_fp = diag_gaussian_forward(x1, w_t, b_row, logstd)
    jax.block_until_ready((mean_fp, logstd_fp))
    assert jnp.allclose(mean_fp, ref1, atol=1e-5), "mean mismatch (fast path)"

    # TODO(synk): sample()/evaluate_actions() (PRNG sampling, log-prob/entropy) are not
    # part of forward() and are left to the caller in plain JAX.
    print("KERNEL_OK")
</pallas_src>

<mosaic_0001>
module attributes {stable_mosaic.version = 11 : i64} {
  func.func @_diag_gaussian_mean_kernel(%arg0: i32, %arg1: memref<8x32xf32, #tpu.memory_space<vmem>>, %arg2: memref<32x8xf32, #tpu.memory_space<vmem>>, %arg3: memref<1x8xf32, #tpu.memory_space<vmem>>, %arg4: memref<8x8xf32, #tpu.memory_space<vmem>>) attributes {dimension_semantics = [#tpu.dimension_semantics<parallel>], iteration_bounds = array<i64: 1>, scalar_prefetch = 0 : i64, scratch_operands = 0 : i64, tpu.core_type = #tpu.core_type<tc>, window_params = [{transform_indices = @transform_0, window_bounds = array<i64: 8, 32>}, {pipeline_mode = #tpu.pipeline_mode<synchronous>, transform_indices = @transform_1, window_bounds = array<i64: 32, 8>}, {pipeline_mode = #tpu.pipeline_mode<synchronous>, transform_indices = @transform_2, window_bounds = array<i64: 1, 8>}, {transform_indices = @transform_3, window_bounds = array<i64: 8, 8>}]} {
    %c0 = arith.constant 0 : index
    %c0_0 = arith.constant 0 : index
    %0 = vector.load %arg1[%c0, %c0_0] : memref<8x32xf32, #tpu.memory_space<vmem>>, vector<8x32xf32>
    %c0_1 = arith.constant 0 : index
    %c0_2 = arith.constant 0 : index
    %1 = vector.load %arg2[%c0_1, %c0_2] : memref<32x8xf32, #tpu.memory_space<vmem>>, vector<32x8xf32>
    %cst = arith.constant dense<0.000000e+00> : vector<8x8xf32>
    %2 = tpu.matmul %0, %1, %cst {dimension_numbers = #tpu.dot_dimension_numbers<[1], [0], [0], [1], [0, 0, 1, 1], [], []>} : vector<8x32xf32>, vector<32x8xf32>, vector<8x8xf32> -> vector<8x8xf32>
    %c0_3 = arith.constant 0 : index
    %c0_4 = arith.constant 0 : index
    %3 = vector.load %arg3[%c0_3, %c0_4] : memref<1x8xf32, #tpu.memory_space<vmem>>, vector<1x8xf32>
    %4 = vector.broadcast %3 : vector<1x8xf32> to vector<8x8xf32>
    %5 = arith.addf %2, %4 : vector<8x8xf32>
    %c0_5 = arith.constant 0 : index
    %c0_6 = arith.constant 0 : index
    %6 = vector.load %arg4[%c0_5, %c0_6] : memref<8x8xf32, #tpu.memory_space<vmem>>, vector<8x8xf32>
    tpu.vector_store %arg4[%c0_5, %c0_6], %5 {strides = array<i32>} : memref<8x8xf32, #tpu.memory_space<vmem>>, vector<8x8xf32>,
    return
  }
  func.func @transform_0(%arg0: i32) -> (i32, i32) {
    %c0_i32 = arith.constant 0 : i32
    %c0_i32_0 = arith.constant 0 : i32
    return %arg0, %c0_i32 : i32, i32
  }
  func.func @transform_1(%arg0: i32) -> (i32, i32) {
    %c0_i32 = arith.constant 0 : i32
    %c0_i32_0 = arith.constant 0 : i32
    %c0_i32_1 = arith.constant 0 : i32
    return %c0_i32, %c0_i32_0 : i32, i32
  }
  func.func @transform_2(%arg0: i32) -> (i32, i32) {
    %c0_i32 = arith.constant 0 : i32
    %c0_i32_0 = arith.constant 0 : i32
    %c0_i32_1 = arith.constant 0 : i32
    return %c0_i32, %c0_i32_0 : i32, i32
  }
  func.func @transform_3(%arg0: i32) -> (i32, i32) {
    %c0_i32 = arith.constant 0 : i32
    %c0_i32_0 = arith.constant 0 : i32
    return %arg0, %c0_i32 : i32, i32
  }
}

</mosaic_0001>

<llo_original>
// kernel: tpu_custom_call.1
$region0: #{tpu_custom_call.1}
  #allocation0 [shape = 'u32[]', space=smem, size = 0x4, offset = 0x4, fixed_abs, tag = 'smem constant byte address 0x4 - core index']
  #allocation1 [shape = 'u32[144,128]{1,0:T(1,128)}', space=vmem, size = 0x12000, scoped, tag = 'internal scratch']
  %s0 = inlined_call_operand.vmem [shape: f32[8,32], index: 0, kind: input, shape index: {}]
  %s1 = inlined_call_operand.vmem [shape: f32[32,8], index: 1, kind: input, shape index: {}]
  %s2 = inlined_call_operand.vmem [shape: f32[1,8], index: 2, kind: input, shape index: {}]
  %s3 = inlined_call_operand.hbm [shape: f32[8,8], index: 3, kind: output, shape index: {}]
  %s4 = sld [smem:[#allocation0]]
  $region22: #{tpu_custom_call.1} parent=0
    _
  %s6 = ssub.s32 1, %s4
  %s7 = scalar_select 0, %s6, %s4
  $region1: #{tpu_custom_call.1} parent=0
    #allocation2 [shape = 'u8[4096]{0}', space=vmem, size = 0x1000, scoped, tag = 'output window, operand 0, single buffered']
    #allocation3 [shape = 's32[1]{0}', space=sflag, size = 0x4, scoped, tag = 'scoped memory for tpu_custom_call.1']
    %8 = vsyncpa [#allocation3], 0
    // Predicated region
    $region2: #{tpu_custom_call.1} parent=1 // pred_check
      _
    $region3: #{tpu_custom_call.1} parent=1 // pred_check_branch
      %10 = sbr.rel (0) target = $region5
    $region4: #{tpu_custom_call.1} parent=1 // pred_region
      _
    $region5: #{tpu_custom_call.1} parent=1 // pred_fallthru
      _
    // Predicated region
    $region6: #{tpu_custom_call.1} parent=1 // pred_check
      _
    $region7: #{tpu_custom_call.1} parent=1 // pred_check_branch
      %12 = sbr.rel (0) target = $region9
    $region8: #{tpu_custom_call.1} parent=1 // pred_region
      _
    $region9: #{tpu_custom_call.1} parent=1 // pred_fallthru
      _
    // Predicated region
    $region10: #{tpu_custom_call.1} parent=1 // pred_check
      _
    $region11: #{tpu_custom_call.1} parent=1 // pred_check_branch
      %14 = sbr.rel (0) target = $region13
    $region12: #{tpu_custom_call.1} parent=1 // pred_region
      _
    $region13: #{tpu_custom_call.1} parent=1 // pred_fallthru
      _
    %v15 = vld [vmem:[%s0] sm:$0xff]
    %v16 = vld [vmem:[%s1] sm:$0xff]
    %v17 = vld [vmem:[%s1 + $0x8] sm:$0xff]
    %v18 = vld [vmem:[%s1 + $0x10] sm:$0xff]
    %v19 = vld [vmem:[%s1 + $0x18] sm:$0xff]
    %v20 = vld [vmem:[%s2] sm:$0x1]
    %v22 = vlaneseq
    %v23 = vshrl.u32 %v22, 7
    %v24 = vsub.s32 0, %v23
    %v25 = vrot.slane %v20, %v24
    %vm27 = vcmask 261120
    %v29 = vsel %vm27, %v15, 0
    %31 = vmatprep.subr.mxu0 0.0
    %32 = vmatpush1.msra.mxu0 0.0
    %33 = vmatprep.subr.mxu0 0.0
    %34 = vmatpush1.msra.mxu0 0.0
    %35 = vmatprep.subr.mxu0 0.0
    %36 = vmatpush1.msra.mxu0 0.0
    %37 = vmatprep.subr.mxu0 0.0
    %38 = vmatpush1.msra.mxu0 0.0
    %39 = vmatprep.subr.mxu0 0.0
    %40 = vmatpush1.msra.mxu0 0.0
    %41 = vmatprep.subr.mxu0 0.0
    %42 = vmatpush1.msra.mxu0 0.0
    %43 = vmatprep.subr.mxu0 0.0
    %44 = vmatpush1.msra.mxu0 0.0
    %45 = vmatprep.subr.mxu0 0.0
    %46 = vmatpush1.msra.mxu0 0.0
    %47 = vmatprep.subr.mxu0 0.0
    %48 = vmatpush1.msra.mxu0 0.0
    %49 = vmatprep.subr.mxu0 0.0
    %50 = vmatpush1.msra.mxu0 0.0
    %51 = vmatprep.subr.mxu0 0.0
    %52 = vmatpush1.msra.mxu0 0.0
    %53 = vmatprep.subr.mxu0 0.0
    %54 = vmatpush1.msra.mxu0 0.0
    %55 = vmatprep.subr.mxu0 0.0
    %56 = vmatpush1.msra.mxu0 %v19
    %57 = vmatprep.subr.mxu0 0.0
    %58 = vmatpush1.msra.mxu0 %v18
    %59 = vmatprep.subr.mxu0 0.0
    %60 = vmatpush1.msra.mxu0 %v17
    %61 = vmatprep.subr.mxu0 0.0
    %62 = vmatpush1.msra.mxu0 %v16
    %63 = vmatprep.subr.mxu0 0.0
    %64 = vmatpush2.msra.mxu0 0.0
    %65 = vmatprep.subr.mxu0 0.0
    %66 = vmatpush2.msra.mxu0 0.0
    %67 = vmatprep.subr.mxu0 0.0
    %68 = vmatpush2.msra.mxu0 0.0
    %69 = vmatprep.subr.mxu0 0.0
    %70 = vmatpush2.msra.mxu0 0.0
    %71 = vmatprep.subr.mxu0 0.0
    %72 = vmatpush2.msra.mxu0 0.0
    %73 = vmatprep.subr.mxu0 0.0
    %74 = vmatpush2.msra.mxu0 0.0
    %75 = vmatprep.subr.mxu0 0.0
    %76 = vmatpush2.msra.mxu0 0.0
    %77 = vmatprep.subr.mxu0 0.0
    %78 = vmatpush2.msra.mxu0 0.0
    %79 = vmatprep.subr.mxu0 0.0
    %80 = vmatpush2.msra.mxu0 0.0
    %81 = vmatprep.subr.mxu0 0.0
    %82 = vmatpush2.msra.mxu0 0.0
    %83 = vmatprep.subr.mxu0 0.0
    %84 = vmatpush2.msra.mxu0 0.0
    %85 = vmatprep.subr.mxu0 0.0
    %86 = vmatpush2.msra.mxu0 0.0
    %87 = vmatprep.subr.mxu0 0.0
    %88 = vmatpush2.msra.mxu0 0.0
    %89 = vmatprep.subr.mxu0 0.0
    %90 = vmatpush2.msra.mxu0 0.0
    %91 = vmatprep.subr.mxu0 0.0
    %92 = vmatpush2.msra.mxu0 0.0
    %93 = vmatprep.subr.mxu0 0.0
    %94 = vmatpush2.msra.mxu0 0.0
    %95 = vmatprep.mubr.f32.mxu0 0.0
    %96 = vmatmul.mubr.f32.gmra.mxu0 %v29
    %v97 = vpop.f32.mrf.mxu0
    %v98 = vadd.f32 %v25, %v97
    %v99 = vpop.f32.mrf.mxu0
    %100 = vdwg.mxu0
    %vm101 = vcmask 64512
    %102 = vst.msk [vmem:[#allocation2] sm:$0xff] %vm101, %v98
    // Predicated region
    $region14: #{tpu_custom_call.1} parent=1 // pred_check
      _
    $region15: #{tpu_custom_call.1} parent=1 // pred_check_branch
      %104 = sbr.rel (0) target = $region17
    $region16: #{tpu_custom_call.1} parent=1 // pred_region
      %s106 = ssub.s32 128, 128
      %107 = vsyncadd [#allocation3], %s106
      %s109 = sshll.u32 [#allocation2], 4
      %s110 = int_to_ptr.vmem [resolvable:$true] %s109
      %112 = dma.vmem_to_hbm [thread:$0]  %s110, 128, %s3, [#allocation3]
    $region17: #{tpu_custom_call.1} parent=1 // pred_fallthru
      _
    // Predicated region
    $region18: #{tpu_custom_call.1} parent=1 // pred_check
      _
    $region19: #{tpu_custom_call.1} parent=1 // pred_check_branch
      %114 = sbr.rel (0) target = $region21
    $region20: #{tpu_custom_call.1} parent=1 // pred_region
      %115 = dma.done [#allocation3], 128
    $region21: #{tpu_custom_call.1} parent=1 // pred_fallthru
      _
    %116 = vsyncpa [#allocation3], 1

</llo_original>
